<compile_context>
chip_gen: v6e
topology: v6e:2x2x1
jax: 0.10.0
libtpu: 0.0.40
codegen_flags: <defaults>
</compile_context>

<pallas_src>
import jax
import jax.numpy as jnp
from jax.experimental import pallas as pl
from jax.experimental.pallas import tpu as pltpu


def lstm_net_forward(x_ids, params):
    """Pallas implementation of LSTM_net.forward with hidden_cell=None."""
    B, T = x_ids.shape
    V, E = params["embed"].shape                    # vocab (= id_max), embed_dim
    H = params["w_hh_t"].shape[0]

    # Time-major flat ids: row t*B + b holds (time t, batch b).  Kept (T*B, 1)
    # so the in-kernel one-hot is a simple lane-broadcast compare.
    ids_tm = jnp.transpose(x_ids, (1, 0)).reshape(T * B, 1).astype(jnp.int32)

    def kernel(idx_ref, embed_ref, wih_ref, whh_ref, b_ref,
               wout_ref, bout_ref, out_ref):
        # ---- fused embedding gather (one-hot @ table on the MXU) ----------
        ids = idx_ref[...]                                       # (T*B, 1) i32
        iota = jax.lax.broadcasted_iota(jnp.int32, (T * B, V), 1)
        onehot = (iota == ids).astype(jnp.float32)               # (T*B, V)
        emb = jnp.dot(onehot, embed_ref[...],
                      preferred_element_type=jnp.float32)        # (T*B, E)

        # ---- hoisted input projection, LSTM bias folded in -----------------
        # gates_x[t*B:(t+1)*B] = x_t @ W_ih^T + (b_ih + b_hh)
        gates_x = (jnp.dot(emb, wih_ref[...],
                           preferred_element_type=jnp.float32)
                   + b_ref[...])                                 # (T*B, 4H)

        whh = whh_ref[...]                                       # (H, 4H)

        # hidden_cell is None in the PyTorch module -> zero initial state.
        h = jnp.zeros((B, H), jnp.float32)
        c = jnp.zeros((B, H), jnp.float32)

        # Fully-unrolled recurrence: only h @ W_hh^T is on the serial path.
        for t in range(T):
            gates = gates_x[t * B:(t + 1) * B, :] + jnp.dot(
                h, whh, preferred_element_type=jnp.float32)      # (B, 4H)
            i = jax.nn.sigmoid(gates[:, 0 * H:1 * H])
            f = jax.nn.sigmoid(gates[:, 1 * H:2 * H])
            g = jnp.tanh(gates[:, 2 * H:3 * H])
            o = jax.nn.sigmoid(gates[:, 3 * H:4 * H])
            c = f * c + i * g
            h = o * jnp.tanh(c)

        # Fused final Linear on the last hidden state only.
        out_ref[...] = (jnp.dot(h, wout_ref[...],
                                preferred_element_type=jnp.float32)
                        + bout_ref[...]).astype(out_ref.dtype)

    vmem = pl.BlockSpec(memory_space=pltpu.MemorySpace.VMEM)
    return pl.pallas_call(
        kernel,
        out_shape=jax.ShapeDtypeStruct((B, V), jnp.float32),
        in_specs=[vmem] * 7,          # whole arrays resident in VMEM, no grid
        out_specs=vmem,
    )(ids_tm, params["embed"], params["w_ih_t"], params["w_hh_t"],
      params["b"], params["w_out_t"], params["b_out"])


def reference_forward(x_ids, params):
    """Pure-JAX reference mirroring the PyTorch forward."""
    emb = params["embed"][x_ids]                    # (B, T, E)
    B, T, E = emb.shape
    H = params["w_hh_t"].shape[0]

    def step(carry, x_t):
        hh, cc = carry
        gates = x_t @ params["w_ih_t"] + hh @ params["w_hh_t"] + params["b"][0]
        i = jax.nn.sigmoid(gates[:, 0 * H:1 * H])
        f = jax.nn.sigmoid(gates[:, 1 * H:2 * H])
        g = jnp.tanh(gates[:, 2 * H:3 * H])
        o = jax.nn.sigmoid(gates[:, 3 * H:4 * H])
        cc = f * cc + i * g
        hh = o * jnp.tanh(cc)
        return (hh, cc), None

    h0 = jnp.zeros((B, H), jnp.float32)
    c0 = jnp.zeros((B, H), jnp.float32)
    (h_last, _), _ = jax.lax.scan(step, (h0, c0), jnp.transpose(emb, (1, 0, 2)))
    return h_last @ params["w_out_t"] + params["b_out"][0]


def make_params(id_max, key):
    embed_dim = id_max // 3     # int(id_max / 3)
    hidden = id_max // 6        # int(id_max / 6)
    ks = jax.random.split(key, 7)
    scale = 0.1
    params = {
        "embed": jax.random.normal(ks[0], (id_max, embed_dim), jnp.float32) * scale,
        # PyTorch stores W_ih as (4H, E); we pass the transpose (E, 4H).
        "w_ih_t": jax.random.normal(ks[1], (embed_dim, 4 * hidden), jnp.float32) * scale,
        "w_hh_t": jax.random.normal(ks[2], (hidden, 4 * hidden), jnp.float32) * scale,
        # b = b_ih + b_hh, kept 2D for TPU-friendly broadcasting.
        "b": (jax.random.normal(ks[3], (1, 4 * hidden), jnp.float32) * scale
              + jax.random.normal(ks[4], (1, 4 * hidden), jnp.float32) * scale),
        "w_out_t": jax.random.normal(ks[5], (hidden, id_max), jnp.float32) * scale,
        "b_out": jax.random.normal(ks[6], (1, id_max), jnp.float32) * scale,
    }
    return params


if __name__ == "__main__":
    ID_MAX = 192          # -> embed_dim = 64, hidden = 32, vocab/out = 192
    B, T = 2, 8

    key = jax.random.PRNGKey(0)
    k_param, k_x = jax.random.split(key)
    params = make_params(ID_MAX, k_param)
    x_ids = jax.random.randint(k_x, (B, T), 0, ID_MAX, dtype=jnp.int32)

    out = lstm_net_forward(x_ids, params)
    out = jax.block_until_ready(out)

    ref = reference_forward(x_ids, params)
    assert out.shape == (B, ID_MAX)
    assert jnp.allclose(out, ref, atol=1e-3, rtol=1e-3), "mismatch vs reference"

    print("KERNEL_OK")
</pallas_src>

<mosaic_0001>
module attributes {stable_mosaic.version = 11 : i64} {
  func.func @kernel(%arg0: memref<16x1xi32, #tpu.memory_space<vmem>>, %arg1: memref<192x64xf32, #tpu.memory_space<vmem>>, %arg2: memref<64x128xf32, #tpu.memory_space<vmem>>, %arg3: memref<32x128xf32, #tpu.memory_space<vmem>>, %arg4: memref<1x128xf32, #tpu.memory_space<vmem>>, %arg5: memref<32x192xf32, #tpu.memory_space<vmem>>, %arg6: memref<1x192xf32, #tpu.memory_space<vmem>>, %arg7: memref<2x192xf32, #tpu.memory_space<vmem>>) attributes {dimension_semantics = [], scalar_prefetch = 0 : i64, scratch_operands = 0 : i64, tpu.core_type = #tpu.core_type<tc>} {
    %c0 = arith.constant 0 : index
    %c0_0 = arith.constant 0 : index
    %0 = vector.load %arg0[%c0, %c0_0] : memref<16x1xi32, #tpu.memory_space<vmem>>, vector<16x1xi32>
    %1 = tpu.iota {dimensions = array<i32: 1>} : vector<16x192xi32>
    %2 = vector.broadcast %0 : vector<16x1xi32> to vector<16x192xi32>
    %3 = arith.cmpi eq, %1, %2 : vector<16x192xi32>
    %4 = arith.extui %3 : vector<16x192xi1> to vector<16x192xi32>
    %5 = arith.sitofp %4 : vector<16x192xi32> to vector<16x192xf32>
    %c0_1 = arith.constant 0 : index
    %c0_2 = arith.constant 0 : index
    %6 = vector.load %arg1[%c0_1, %c0_2] : memref<192x64xf32, #tpu.memory_space<vmem>>, vector<192x64xf32>
    %cst = arith.constant dense<0.000000e+00> : vector<16x64xf32>
    %7 = tpu.matmul %5, %6, %cst {dimension_numbers = #tpu.dot_dimension_numbers<[1], [0], [0], [1], [0, 0, 1, 1], [], []>} : vector<16x192xf32>, vector<192x64xf32>, vector<16x64xf32> -> vector<16x64xf32>
    %c0_3 = arith.constant 0 : index
    %c0_4 = arith.constant 0 : index
    %8 = vector.load %arg2[%c0_3, %c0_4] : memref<64x128xf32, #tpu.memory_space<vmem>>, vector<64x128xf32>
    %cst_5 = arith.constant dense<0.000000e+00> : vector<16x128xf32>
    %9 = tpu.matmul %7, %8, %cst_5 {dimension_numbers = #tpu.dot_dimension_numbers<[1], [0], [0], [1], [0, 0, 1, 1], [], []>} : vector<16x64xf32>, vector<64x128xf32>, vector<16x128xf32> -> vector<16x128xf32>
    %c0_6 = arith.constant 0 : index
    %c0_7 = arith.constant 0 : index
    %10 = vector.load %arg4[%c0_6, %c0_7] : memref<1x128xf32, #tpu.memory_space<vmem>>, vector<1x128xf32>
    %11 = vector.broadcast %10 : vector<1x128xf32> to vector<16x128xf32>
    %12 = arith.addf %9, %11 : vector<16x128xf32>
    %c0_8 = arith.constant 0 : index
    %c0_9 = arith.constant 0 : index
    %13 = vector.load %arg3[%c0_8, %c0_9] : memref<32x128xf32, #tpu.memory_space<vmem>>, vector<32x128xf32>
    %cst_10 = arith.constant 0.000000e+00 : f32
    %14 = vector.broadcast %cst_10 : f32 to vector<2x32xf32>
    %cst_11 = arith.constant 0.000000e+00 : f32
    %15 = vector.broadcast %cst_11 : f32 to vector<2x32xf32>
    %16 = vector.extract_strided_slice %12 {offsets = [0, 0], sizes = [2, 128], strides = [1, 1]} : vector<16x128xf32> to vector<2x128xf32>
    %cst_12 = arith.constant dense<0.000000e+00> : vector<2x128xf32>
    %17 = tpu.matmul %14, %13, %cst_12 {dimension_numbers = #tpu.dot_dimension_numbers<[1], [0], [0], [1], [0, 0, 1, 1], [], []>} : vector<2x32xf32>, vector<32x128xf32>, vector<2x128xf32> -> vector<2x128xf32>
    %18 = arith.addf %16, %17 : vector<2x128xf32>
    %19 = vector.extract_strided_slice %18 {offsets = [0, 0], sizes = [2, 32], strides = [1, 1]} : vector<2x128xf32> to vector<2x32xf32>
    %20 = arith.negf %19 : vector<2x32xf32>
    %21 = math.exp %20 : vector<2x32xf32>
    %cst_13 = arith.constant 1.000000e+00 : f32
    %22 = vector.broadcast %cst_13 : f32 to vector<2x32xf32>
    %23 = arith.addf %22, %21 : vector<2x32xf32>
    %24 = arith.divf %22, %23 : vector<2x32xf32>
    %25 = vector.extract_strided_slice %18 {offsets = [0, 32], sizes = [2, 32], strides = [1, 1]} : vector<2x128xf32> to vector<2x32xf32>
    %26 = arith.negf %25 : vector<2x32xf32>
    %27 = math.exp %26 : vector<2x32xf32>
    %cst_14 = arith.constant 1.000000e+00 : f32
    %28 = vector.broadcast %cst_14 : f32 to vector<2x32xf32>
    %29 = arith.addf %28, %27 : vector<2x32xf32>
    %30 = arith.divf %28, %29 : vector<2x32xf32>
    %31 = vector.extract_strided_slice %18 {offsets = [0, 64], sizes = [2, 32], strides = [1, 1]} : vector<2x128xf32> to vector<2x32xf32>
    %32 = math.tanh %31 : vector<2x32xf32>
    %33 = vector.extract_strided_slice %18 {offsets = [0, 96], sizes = [2, 32], strides = [1, 1]} : vector<2x128xf32> to vector<2x32xf32>
    %34 = arith.negf %33 : vector<2x32xf32>
    %35 = math.exp %34 : vector<2x32xf32>
    %cst_15 = arith.constant 1.000000e+00 : f32
    %36 = vector.broadcast %cst_15 : f32 to vector<2x32xf32>
    %37 = arith.addf %36, %35 : vector<2x32xf32>
    %38 = arith.divf %36, %37 : vector<2x32xf32>
    %39 = arith.mulf %30, %15 : vector<2x32xf32>
    %40 = arith.mulf %24, %32 : vector<2x32xf32>
    %41 = arith.addf %39, %40 : vector<2x32xf32>
    %42 = math.tanh %41 : vector<2x32xf32>
    %43 = arith.mulf %38, %42 : vector<2x32xf32>
    %44 = vector.extract_strided_slice %12 {offsets = [2, 0], sizes = [2, 128], strides = [1, 1]} : vector<16x128xf32> to vector<2x128xf32>
    %cst_16 = arith.constant dense<0.000000e+00> : vector<2x128xf32>
    %45 = tpu.matmul %43, %13, %cst_16 {dimension_numbers = #tpu.dot_dimension_numbers<[1], [0], [0], [1], [0, 0, 1, 1], [], []>} : vector<2x32xf32>, vector<32x128xf32>, vector<2x128xf32> -> vector<2x128xf32>
    %46 = arith.addf %44, %45 : vector<2x128xf32>
    %47 = vector.extract_strided_slice %46 {offsets = [0, 0], sizes = [2, 32], strides = [1, 1]} : vector<2x128xf32> to vector<2x32xf32>
    %48 = arith.negf %47 : vector<2x32xf32>
    %49 = math.exp %48 : vector<2x32xf32>
    %cst_17 = arith.constant 1.000000e+00 : f32
    %50 = vector.broadcast %cst_17 : f32 to vector<2x32xf32>
    %51 = arith.addf %50, %49 : vector<2x32xf32>
    %52 = arith.divf %50, %51 : vector<2x32xf32>
    %53 = vector.extract_strided_slice %46 {offsets = [0, 32], sizes = [2, 32], strides = [1, 1]} : vector<2x128xf32> to vector<2x32xf32>
    %54 = arith.negf %53 : vector<2x32xf32>
    %55 = math.exp %54 : vector<2x32xf32>
    %cst_18 = arith.constant 1.000000e+00 : f32
    %56 = vector.broadcast %cst_18 : f32 to vector<2x32xf32>
    %57 = arith.addf %56, %55 : vector<2x32xf32>
    %58 = arith.divf %56, %57 : vector<2x32xf32>
    %59 = vector.extract_strided_slice %46 {offsets = [0, 64], sizes = [2, 32], strides = [1, 1]} : vector<2x128xf32> to vector<2x32xf32>
    %60 = math.tanh %59 : vector<2x32xf32>
    %61 = vector.extract_strided_slice %46 {offsets = [0, 96], sizes = [2, 32], strides = [1, 1]} : vector<2x128xf32> to vector<2x32xf32>
    %62 = arith.negf %61 : vector<2x32xf32>
    %63 = math.exp %62 : vector<2x32xf32>
    %cst_19 = arith.constant 1.000000e+00 : f32
    %64 = vector.broadcast %cst_19 : f32 to vector<2x32xf32>
    %65 = arith.addf %64, %63 : vector<2x32xf32>
    %66 = arith.divf %64, %65 : vector<2x32xf32>
    %67 = arith.mulf %58, %41 : vector<2x32xf32>
    %68 = arith.mulf %52, %60 : vector<2x32xf32>
    %69 = arith.addf %67, %68 : vector<2x32xf32>
    %70 = math.tanh %69 : vector<2x32xf32>
    %71 = arith.mulf %66, %70 : vector<2x32xf32>
    %72 = vector.extract_strided_slice %12 {offsets = [4, 0], sizes = [2, 128], strides = [1, 1]} : vector<16x128xf32> to vector<2x128xf32>
    %cst_20 = arith.constant dense<0.000000e+00> : vector<2x128xf32>
    %73 = tpu.matmul %71, %13, %cst_20 {dimension_numbers = #tpu.dot_dimension_numbers<[1], [0], [0], [1], [0, 0, 1, 1], [], []>} : vector<2x32xf32>, vector<32x128xf32>, vector<2x128xf32> -> vector<2x128xf32>
    %74 = arith.addf %72, %73 : vector<2x128xf32>
    %75 = vector.extract_strided_slice %74 {offsets = [0, 0], sizes = [2, 32], strides = [1, 1]} : vector<2x128xf32> to vector<2x32xf32>
    %76 = arith.negf %75 : vector<2x32xf32>
    %77 = math.exp %76 : vector<2x32xf32>
    %cst_21 = arith.constant 1.000000e+00 : f32
    %78 = vector.broadcast %cst_21 : f32 to vector<2x32xf32>
    %79 = arith.addf %78, %77 : vector<2x32xf32>
    %80 = arith.divf %78, %79 : vector<2x32xf32>
    %81 = vector.extract_strided_slice %74 {offsets = [0, 32], sizes = [2, 32], strides = [1, 1]} : vector<2x128xf32> to vector<2x32xf32>
    %82 = arith.negf %81 : vector<2x32xf32>
    %83 = math.exp %82 : vector<2x32xf32>
    %cst_22 = arith.constant 1.000000e+00 : f32
    %84 = vector.broadcast %cst_22 : f32 to vector<2x32xf32>
    %85 = arith.addf %84, %83 : vector<2x32xf32>
    %86 = arith.divf %84, %85 : vector<2x32xf32>
    %87 = vector.extract_strided_slice %74 {offsets = [0, 64], sizes = [2, 32], strides = [1, 1]} : vector<2x128xf32> to vector<2x32xf32>
    %88 = math.tanh %87 : vector<2x32xf32>
    %89 = vector.extract_strided_slice %74 {offsets = [0, 96], sizes = [2, 32], strides = [1, 1]} : vector<2x128xf32> to vector<2x32xf32>
    %90 = arith.negf %89 : vector<2x32xf32>
    %91 = math.exp %90 : vector<2x32xf32>
    %cst_23 = arith.constant 1.000000e+00 : f32
    %92 = vector.broadcast %cst_23 : f32 to vector<2x32xf32>
    %93 = arith.addf %92, %91 : vector<2x32xf32>
    %94 = arith.divf %92, %93 : vector<2x32xf32>
    %95 = arith.mulf %86, %69 : vector<2x32xf32>
    %96 = arith.mulf %80, %88 : vector<2x32xf32>
    %97 = arith.addf %95, %96 : vector<2x32xf32>
    %98 = math.tanh %97 : vector<2x32xf32>
    %99 = arith.mulf %94, %98 : vector<2x32xf32>
    %100 = vector.extract_strided_slice %12 {offsets = [6, 0], sizes = [2, 128], strides = [1, 1]} : vector<16x128xf32> to vector<2x128xf32>
    %cst_24 = arith.constant dense<0.000000e+00> : vector<2x128xf32>
    %101 = tpu.matmul %99, %13, %cst_24 {dimension_numbers = #tpu.dot_dimension_numbers<[1], [0], [0], [1], [0, 0, 1, 1], [], []>} : vector<2x32xf32>, vector<32x128xf32>, vector<2x128xf32> -> vector<2x128xf32>
    %102 = arith.addf %100, %101 : vector<2x128xf32>
    %103 = vector.extract_strided_slice %102 {offsets = [0, 0], sizes = [2, 32], strides = [1, 1]} : vector<2x128xf32> to vector<2x32xf32>
    %104 = arith.negf %103 : vector<2x32xf32>
    %105 = math.exp %104 : vector<2x32xf32>
    %cst_25 = arith.constant 1.000000e+00 : f32
    %106 = vector.broadcast %cst_25 : f32 to vector<2x32xf32>
    %107 = arith.addf %106, %105 : vector<2x32xf32>
    %108 = arith.divf %106, %107 : vector<2x32xf32>
    %109 = vector.extract_strided_slice %102 {offsets = [0, 32], sizes = [2, 32], strides = [1, 1]} : vector<2x128xf32> to vector<2x32xf32>
    %110 = arith.negf %109 : vector<2x32xf32>
    %111 = math.exp %110 : vector<2x32xf32>
    %cst_26 = arith.constant 1.000000e+00 : f32
    %112 = vector.broadcast %cst_26 : f32 to vector<2x32xf32>
    %113 = arith.addf %112, %111 : vector<2x32xf32>
    %114 = arith.divf %112, %113 : vector<2x32xf32>
    %115 = vector.extract_strided_slice %102 {offsets = [0, 64], sizes = [2, 32], strides = [1, 1]} : vector<2x128xf32> to vector<2x32xf32>
    %116 = math.tanh %115 : vector<2x32xf32>
    %117 = vector.extract_strided_slice %102 {offsets = [0, 96], sizes = [2, 32], strides = [1, 1]} : vector<2x128xf32> to vector<2x32xf32>
    %118 = arith.negf %117 : vector<2x32xf32>
    %119 = math.exp %118 : vector<2x32xf32>
    %cst_27 = arith.constant 1.000000e+00 : f32
    %120 = vector.broadcast %cst_27 : f32 to vector<2x32xf32>
    %121 = arith.addf %120, %119 : vector<2x32xf32>
    %122 = arith.divf %120, %121 : vector<2x32xf32>
    %123 = arith.mulf %114, %97 : vector<2x32xf32>
    %124 = arith.mulf %108, %116 : vector<2x32xf32>
    %125 = arith.addf %123, %124 : vector<2x32xf32>
    %126 = math.tanh %125 : vector<2x32xf32>
    %127 = arith.mulf %122, %126 : vector<2x32xf32>
    %128 = vector.extract_strided_slice %12 {offsets = [8, 0], sizes = [2, 128], strides = [1, 1]} : vector<16x128xf32> to vector<2x128xf32>
    %cst_28 = arith.constant dense<0.000000e+00> : vector<2x128xf32>
    %129 = tpu.matmul %127, %13, %cst_28 {dimension_numbers = #tpu.dot_dimension_numbers<[1], [0], [0], [1], [0, 0, 1, 1], [], []>} : vector<2x32xf32>, vector<32x128xf32>, vector<2x128xf32> -> vector<2x128xf32>
    %130 = arith.addf %128, %129 : vector<2x128xf32>
    %131 = vector.extract_strided_slice %130 {offsets = [0, 0], sizes = [2, 32], strides = [1, 1]} : vector<2x128xf32> to vector<2x32xf32>
    %132 = arith.negf %131 : vector<2x32xf32>
    %133 = math.exp %132 : vector<2x32xf32>
    %cst_29 = arith.constant 1.000000e+00 : f32
    %134 = vector.broadcast %cst_29 : f32 to vector<2x32xf32>
    %135 = arith.addf %134, %133 : vector<2x32xf32>
    %136 = arith.divf %134, %135 : vector<2x32xf32>
    %137 = vector.extract_strided_slice %130 {offsets = [0, 32], sizes = [2, 32], strides = [1, 1]} : vector<2x128xf32> to vector<2x32xf32>
    %138 = arith.negf %137 : vector<2x32xf32>
    %139 = math.exp %138 : vector<2x32xf32>
    %cst_30 = arith.constant 1.000000e+00 : f32
    %140 = vector.broadcast %cst_30 : f32 to vector<2x32xf32>
    %141 = arith.addf %140, %139 : vector<2x32xf32>
    %142 = arith.divf %140, %141 : vector<2x32xf32>
    %143 = vector.extract_strided_slice %130 {offsets = [0, 64], sizes = [2, 32], strides = [1, 1]} : vector<2x128xf32> to vector<2x32xf32>
    %144 = math.tanh %143 : vector<2x32xf32>
    %145 = vector.extract_strided_slice %130 {offsets = [0, 96], sizes = [2, 32], strides = [1, 1]} : vector<2x128xf32> to vector<2x32xf32>
    %146 = arith.negf %145 : vector<2x32xf32>
    %147 = math.exp %146 : vector<2x32xf32>
    %cst_31 = arith.constant 1.000000e+00 : f32
    %148 = vector.broadcast %cst_31 : f32 to vector<2x32xf32>
    %149 = arith.addf %148, %147 : vector<2x32xf32>
    %150 = arith.divf %148, %149 : vector<2x32xf32>
    %151 = arith.mulf %142, %125 : vector<2x32xf32>
    %152 = arith.mulf %136, %144 : vector<2x32xf32>
    %153 = arith.addf %151, %152 : vector<2x32xf32>
    %154 = math.tanh %153 : vector<2x32xf32>
    %155 = arith.mulf %150, %154 : vector<2x32xf32>
    %156 = vector.extract_strided_slice %12 {offsets = [10, 0], sizes = [2, 128], strides = [1, 1]} : vector<16x128xf32> to vector<2x128xf32>
    %cst_32 = arith.constant dense<0.000000e+00> : vector<2x128xf32>
    %157 = tpu.matmul %155, %13, %cst_32 {dimension_numbers = #tpu.dot_dimension_numbers<[1], [0], [0], [1], [0, 0, 1, 1], [], []>} : vector<2x32xf32>, vector<32x128xf32>, vector<2x128xf32> -> vector<2x128xf32>
    %158 = arith.addf %156, %157 : vector<2x128xf32>
    %159 = vector.extract_strided_slice %158 {offsets = [0, 0], sizes = [2, 32], strides = [1, 1]} : vector<2x128xf32> to vector<2x32xf32>
    %160 = arith.negf %159 : vector<2x32xf32>
    %161 = math.exp %160 : vector<2x32xf32>
    %cst_33 = arith.constant 1.000000e+00 : f32
    %162 = vector.broadcast %cst_33 : f32 to vector<2x32xf32>
    %163 = arith.addf %162, %161 : vector<2x32xf32>
    %164 = arith.divf %162, %163 : vector<2x32xf32>
    %165 = vector.extract_strided_slice %158 {offsets = [0, 32], sizes = [2, 32], strides = [1, 1]} : vector<2x128xf32> to vector<2x32xf32>
    %166 = arith.negf %165 : vector<2x32xf32>
    %167 = math.exp %166 : vector<2x32xf32>
    %cst_34 = arith.constant 1.000000e+00 : f32
    %168 = vector.broadcast %cst_34 : f32 to vector<2x32xf32>
    %169 = arith.addf %168, %167 : vector<2x32xf32>
    %170 = arith.divf %168, %169 : vector<2x32xf32>
    %171 = vector.extract_strided_slice %158 {offsets = [0, 64], sizes = [2, 32], strides = [1, 1]} : vector<2x128xf32> to vector<2x32xf32>
    %172 = math.tanh %171 : vector<2x32xf32>
    %173 = vector.extract_strided_slice %158 {offsets = [0, 96], sizes = [2, 32], strides = [1, 1]} : vector<2x128xf32> to vector<2x32xf32>
    %174 = arith.negf %173 : vector<2x32xf32>
    %175 = math.exp %174 : vector<2x32xf32>
    %cst_35 = arith.constant 1.000000e+00 : f32
    %176 = vector.broadcast %cst_35 : f32 to vector<2x32xf32>
    %177 = arith.addf %176, %175 : vector<2x32xf32>
    %178 = arith.divf %176, %177 : vector<2x32xf32>
    %179 = arith.mulf %170, %153 : vector<2x32xf32>
    %180 = arith.mulf %164, %172 : vector<2x32xf32>
    %181 = arith.addf %179, %180 : vector<2x32xf32>
    %182 = math.tanh %181 : vector<2x32xf32>
    %183 = arith.mulf %178, %182 : vector<2x32xf32>
    %184 = vector.extract_strided_slice %12 {offsets = [12, 0], sizes = [2, 128], strides = [1, 1]} : vector<16x128xf32> to vector<2x128xf32>
    %cst_36 = arith.constant dense<0.000000e+00> : vector<2x128xf32>
    %185 = tpu.matmul %183, %13, %cst_36 {dimension_numbers = #tpu.dot_dimension_numbers<[1], [0], [0], [1], [0, 0, 1, 1], [], []>} : vector<2x32xf32>, vector<32x128xf32>, vector<2x128xf32> -> vector<2x128xf32>
    %186 = arith.addf %184, %185 : vector<2x128xf32>
    %187 = vector.extract_strided_slice %186 {offsets = [0, 0], sizes = [2, 32], strides = [1, 1]} : vector<2x128xf32> to vector<2x32xf32>
    %188 = arith.negf %187 : vector<2x32xf32>
    %189 = math.exp %188 : vector<2x32xf32>
    %cst_37 = arith.constant 1.000000e+00 : f32
    %190 = vector.broadcast %cst_37 : f32 to vector<2x32xf32>
    %191 = arith.addf %190, %189 : vector<2x32xf32>
    %192 = arith.divf %190, %191 : vector<2x32xf32>
    %193 = vector.extract_strided_slice %186 {offsets = [0, 32], sizes = [2, 32], strides = [1, 1]} : vector<2x128xf32> to vector<2x32xf32>
    %194 = arith.negf %193 : vector<2x32xf32>
    %195 = math.exp %194 : vector<2x32xf32>
    %cst_38 = arith.constant 1.000000e+00 : f32
    %196 = vector.broadcast %cst_38 : f32 to vector<2x32xf32>
    %197 = arith.addf %196, %195 : vector<2x32xf32>
    %198 = arith.divf %196, %197 : vector<2x32xf32>
    %199 = vector.extract_strided_slice %186 {offsets = [0, 64], sizes = [2, 32], strides = [1, 1]} : vector<2x128xf32> to vector<2x32xf32>
    %200 = math.tanh %199 : vector<2x32xf32>
    %201 = vector.extract_strided_slice %186 {offsets = [0, 96], sizes = [2, 32], strides = [1, 1]} : vector<2x128xf32> to vector<2x32xf32>
    %202 = arith.negf %201 : vector<2x32xf32>
    %203 = math.exp %202 : vector<2x32xf32>
    %cst_39 = arith.constant 1.000000e+00 : f32
    %204 = vector.broadcast %cst_39 : f32 to vector<2x32xf32>
    %205 = arith.addf %204, %203 : vector<2x32xf32>
    %206 = arith.divf %204, %205 : vector<2x32xf32>
    %207 = arith.mulf %198, %181 : vector<2x32xf32>
    %208 = arith.mulf %192, %200 : vector<2x32xf32>
    %209 = arith.addf %207, %208 : vector<2x32xf32>
    %210 = math.tanh %209 : vector<2x32xf32>
    %211 = arith.mulf %206, %210 : vector<2x32xf32>
    %212 = vector.extract_strided_slice %12 {offsets = [14, 0], sizes = [2, 128], strides = [1, 1]} : vector<16x128xf32> to vector<2x128xf32>
    %cst_40 = arith.constant dense<0.000000e+00> : vector<2x128xf32>
    %213 = tpu.matmul %211, %13, %cst_40 {dimension_numbers = #tpu.dot_dimension_numbers<[1], [0], [0], [1], [0, 0, 1, 1], [], []>} : vector<2x32xf32>, vector<32x128xf32>, vector<2x128xf32> -> vector<2x128xf32>
    %214 = arith.addf %212, %213 : vector<2x128xf32>
    %215 = vector.extract_strided_slice %214 {offsets = [0, 0], sizes = [2, 32], strides = [1, 1]} : vector<2x128xf32> to vector<2x32xf32>
    %216 = arith.negf %215 : vector<2x32xf32>
    %217 = math.exp %216 : vector<2x32xf32>
    %cst_41 = arith.constant 1.000000e+00 : f32
    %218 = vector.broadcast %cst_41 : f32 to vector<2x32xf32>
    %219 = arith.addf %218, %217 : vector<2x32xf32>
    %220 = arith.divf %218, %219 : vector<2x32xf32>
    %221 = vector.extract_strided_slice %214 {offsets = [0, 32], sizes = [2, 32], strides = [1, 1]} : vector<2x128xf32> to vector<2x32xf32>
    %222 = arith.negf %221 : vector<2x32xf32>
    %223 = math.exp %222 : vector<2x32xf32>
    %cst_42 = arith.constant 1.000000e+00 : f32
    %224 = vector.broadcast %cst_42 : f32 to vector<2x32xf32>
    %225 = arith.addf %224, %223 : vector<2x32xf32>
    %226 = arith.divf %224, %225 : vector<2x32xf32>
    %227 = vector.extract_strided_slice %214 {offsets = [0, 64], sizes = [2, 32], strides = [1, 1]} : vector<2x128xf32> to vector<2x32xf32>
    %228 = math.tanh %227 : vector<2x32xf32>
    %229 = vector.extract_strided_slice %214 {offsets = [0, 96], sizes = [2, 32], strides = [1, 1]} : vector<2x128xf32> to vector<2x32xf32>
    %230 = arith.negf %229 : vector<2x32xf32>
    %231 = math.exp %230 : vector<2x32xf32>
    %cst_43 = arith.constant 1.000000e+00 : f32
    %232 = vector.broadcast %cst_43 : f32 to vector<2x32xf32>
    %233 = arith.addf %232, %231 : vector<2x32xf32>
    %234 = arith.divf %232, %233 : vector<2x32xf32>
    %235 = arith.mulf %226, %209 : vector<2x32xf32>
    %236 = arith.mulf %220, %228 : vector<2x32xf32>
    %237 = arith.addf %235, %236 : vector<2x32xf32>
    %238 = math.tanh %237 : vector<2x32xf32>
    %239 = arith.mulf %234, %238 : vector<2x32xf32>
    %c0_44 = arith.constant 0 : index
    %c0_45 = arith.constant 0 : index
    %240 = vector.load %arg5[%c0_44, %c0_45] : memref<32x192xf32, #tpu.memory_space<vmem>>, vector<32x192xf32>
    %cst_46 = arith.constant dense<0.000000e+00> : vector<2x192xf32>
    %241 = tpu.matmul %239, %240, %cst_46 {dimension_numbers = #tpu.dot_dimension_numbers<[1], [0], [0], [1], [0, 0, 1, 1], [], []>} : vector<2x32xf32>, vector<32x192xf32>, vector<2x192xf32> -> vector<2x192xf32>
    %c0_47 = arith.constant 0 : index
    %c0_48 = arith.constant 0 : index
    %242 = vector.load %arg6[%c0_47, %c0_48] : memref<1x192xf32, #tpu.memory_space<vmem>>, vector<1x192xf32>
    %243 = vector.broadcast %242 : vector<1x192xf32> to vector<2x192xf32>
    %244 = arith.addf %241, %243 : vector<2x192xf32>
    %c0_49 = arith.constant 0 : index
    %c0_50 = arith.constant 0 : index
    %245 = vector.load %arg7[%c0_49, %c0_50] : memref<2x192xf32, #tpu.memory_space<vmem>>, vector<2x192xf32>
    tpu.vector_store %arg7[%c0_49, %c0_50], %244 {strides = array<i32>} : memref<2x192xf32, #tpu.memory_space<vmem>>, vector<2x192xf32>,
    return
  }
}

</mosaic_0001>

<llo_original>
// kernel: tpu_custom_call.1
$region0: #{tpu_custom_call.1}
  #allocation0 [shape = 'u32[]', space=smem, size = 0x4, offset = 0x4, fixed_abs, tag = 'smem constant byte address 0x4 - core index']
  #allocation1 [shape = 'u32[144,128]{1,0:T(1,128)}', space=vmem, size = 0x12000, scoped, tag = 'internal scratch']
  %s0 = inlined_call_operand.vmem [shape: s32[16,1], index: 0, kind: input, shape index: {}]
  %s1 = inlined_call_operand.vmem [shape: f32[192,64], index: 1, kind: input, shape index: {}]
  %s2 = inlined_call_operand.vmem [shape: f32[64,128], index: 2, kind: input, shape index: {}]
  %s3 = inlined_call_operand.vmem [shape: f32[32,128], index: 3, kind: input, shape index: {}]
  %s4 = inlined_call_operand.vmem [shape: f32[1,128], index: 4, kind: input, shape index: {}]
  %s5 = inlined_call_operand.vmem [shape: f32[32,192], index: 5, kind: input, shape index: {}]
  %s6 = inlined_call_operand.vmem [shape: f32[1,192], index: 6, kind: input, shape index: {}]
  %s7 = inlined_call_operand.hbm [shape: f32[2,192], index: 7, kind: output, shape index: {}]
  %s8 = sld [smem:[#allocation0]]
  $region38: #{tpu_custom_call.1} parent=0
    _
  %s10 = ssub.s32 1, %s8
  %s11 = scalar_select 0, %s10, %s8
  $region1: #{tpu_custom_call.1} parent=0
    #allocation2 [shape = 'u8[2048]{0}', space=vmem, size = 0x800, scoped, tag = 'output window, operand 0, single buffered']
    #allocation3 [shape = 's32[1]{0}', space=sflag, size = 0x4, scoped, tag = 'scoped memory for tpu_custom_call.1']
    %12 = vsyncpa [#allocation3], 0
    // Predicated region
    $region2: #{tpu_custom_call.1} parent=1 // pred_check
      _
    $region3: #{tpu_custom_call.1} parent=1 // pred_check_branch
      %14 = sbr.rel (0) target = $region5
    $region4: #{tpu_custom_call.1} parent=1 // pred_region
      _
    $region5: #{tpu_custom_call.1} parent=1 // pred_fallthru
      _
    // Predicated region
    $region6: #{tpu_custom_call.1} parent=1 // pred_check
      _
    $region7: #{tpu_custom_call.1} parent=1 // pred_check_branch
      %16 = sbr.rel (0) target = $region9
    $region8: #{tpu_custom_call.1} parent=1 // pred_region
      _
    $region9: #{tpu_custom_call.1} parent=1 // pred_fallthru
      _
    // Predicated region
    $region10: #{tpu_custom_call.1} parent=1 // pred_check
      _
    $region11: #{tpu_custom_call.1} parent=1 // pred_check_branch
      %18 = sbr.rel (0) target = $region13
    $region12: #{tpu_custom_call.1} parent=1 // pred_region
      _
    $region13: #{tpu_custom_call.1} parent=1 // pred_fallthru
      _
    // Predicated region
    $region14: #{tpu_custom_call.1} parent=1 // pred_check
      _
    $region15: #{tpu_custom_call.1} parent=1 // pred_check_branch
      %20 = sbr.rel (0) target = $region17
    $region16: #{tpu_custom_call.1} parent=1 // pred_region
      _
    $region17: #{tpu_custom_call.1} parent=1 // pred_fallthru
      _
    // Predicated region
    $region18: #{tpu_custom_call.1} parent=1 // pred_check
      _
    $region19: #{tpu_custom_call.1} parent=1 // pred_check_branch
      %22 = sbr.rel (0) target = $region21
    $region20: #{tpu_custom_call.1} parent=1 // pred_region
      _
    $region21: #{tpu_custom_call.1} parent=1 // pred_fallthru
      _
    // Predicated region
    $region22: #{tpu_custom_call.1} parent=1 // pred_check
      _
    $region23: #{tpu_custom_call.1} parent=1 // pred_check_branch
      %24 = sbr.rel (0) target = $region25
    $region24: #{tpu_custom_call.1} parent=1 // pred_region
      _
    $region25: #{tpu_custom_call.1} parent=1 // pred_fallthru
      _
    // Predicated region
    $region26: #{tpu_custom_call.1} parent=1 // pred_check
      _
    $region27: #{tpu_custom_call.1} parent=1 // pred_check_branch
      %26 = sbr.rel (0) target = $region29
    $region28: #{tpu_custom_call.1} parent=1 // pred_region
      _
    $region29: #{tpu_custom_call.1} parent=1 // pred_fallthru
      _
    %v27 = vld [vmem:[%s0] sm:$0xff]
    %v28 = vld [vmem:[%s0 + $0x8] sm:$0xff]
    %v29 = vlaneseq
    %v30 = vand.u32 %v29, 127
    %v31 = vadd.s32 %v30, 128
    %32 = vset.pattern.permute.xlu0 0
    %33 = vperm.xlu0 %32, %v27
    %v34 = vpop.permute.xlu0 %33
    %35 = vset.pattern.permute.xlu0 0
    %36 = vperm.xlu0 %35, %v28
    %v37 = vpop.permute.xlu0 %36
    %vm38 = vcmp.eq.s32.totalorder %v30, %v34
    %vm39 = vcmp.eq.s32.totalorder %v31, %v34
    %vm40 = vcmp.eq.s32.totalorder %v30, %v37
    %vm41 = vcmp.eq.s32.totalorder %v31, %v37
    %v42 = vsel %vm38, 1, 0
    %v43 = vsel %vm39, 1, 0
    %v44 = vsel %vm40, 1, 0
    %v45 = vsel %vm41, 1, 0
    %v46 = vcvt.s32.f32 %v42
    %v47 = vcvt.s32.f32 %v43
    %v48 = vcvt.s32.f32 %v44
    %v49 = vcvt.s32.f32 %v45
    %v50 = vld [vmem:[%s1] sm:$0xff]
    %v51 = vld [vmem:[%s1 + $0x8] sm:$0xff]
    %v52 = vld [vmem:[%s1 + $0x10] sm:$0xff]
    %v53 = vld [vmem:[%s1 + $0x18] sm:$0xff]
    %v54 = vld [vmem:[%s1 + $0x20] sm:$0xff]
    %v55 = vld [vmem:[%s1 + $0x28] sm:$0xff]
    %v56 = vld [vmem:[%s1 + $0x30] sm:$0xff]
    %v57 = vld [vmem:[%s1 + $0x38] sm:$0xff]
    %v58 = vld [vmem:[%s1 + $0x40] sm:$0xff]
    %v59 = vld [vmem:[%s1 + $0x48] sm:$0xff]
    %v60 = vld [vmem:[%s1 + $0x50] sm:$0xff]
    %v61 = vld [vmem:[%s1 + $0x58] sm:$0xff]
    %v62 = vld [vmem:[%s1 + $0x60] sm:$0xff]
    %v63 = vld [vmem:[%s1 + $0x68] sm:$0xff]
    %v64 = vld [vmem:[%s1 + $0x70] sm:$0xff]
    %v65 = vld [vmem:[%s1 + $0x78] sm:$0xff]
    %v66 = vld [vmem:[%s1 + $0x80] sm:$0xff]
    %v67 = vld [vmem:[%s1 + $0x88] sm:$0xff]
    %v68 = vld [vmem:[%s1 + $0x90] sm:$0xff]
    %v69 = vld [vmem:[%s1 + $0x98] sm:$0xff]
    %v70 = vld [vmem:[%s1 + $0xa0] sm:$0xff]
    %v71 = vld [vmem:[%s1 + $0xa8] sm:$0xff]
    %v72 = vld [vmem:[%s1 + $0xb0] sm:$0xff]
    %v73 = vld [vmem:[%s1 + $0xb8] sm:$0xff]
    %vm74 = vcmask 523264
    %v76 = vsel %vm74, %v47, 0
    %v79 = vsel %vm74, %v49, 0
    %81 = vmatprep.subr.mxu0 0.0
    %82 = vmatpush1.msra.mxu0 %v65
    %83 = vmatprep.subr.mxu0 0.0
    %84 = vmatpush1.msra.mxu0 %v64
    %85 = vmatprep.subr.mxu0 0.0
    %86 = vmatpush1.msra.mxu0 %v63
    %87 = vmatprep.subr.mxu0 0.0
    %88 = vmatpush1.msra.mxu0 %v62
    %89 = vmatprep.subr.mxu0 0.0
    %90 = vmatpush1.msra.mxu0 %v61
    %91 = vmatprep.subr.mxu0 0.0
    %92 = vmatpush1.msra.mxu0 %v60
    %93 = vmatprep.subr.mxu0 0.0
    %94 = vmatpush1.msra.mxu0 %v59
    %95 = vmatprep.subr.mxu0 0.0
    %96 = vmatpush1.msra.mxu0 %v58
    %97 = vmatprep.subr.mxu0 0.0
    %98 = vmatpush1.msra.mxu0 %v57
    %99 = vmatprep.subr.mxu0 0.0
    %100 = vmatpush1.msra.mxu0 %v56
    %101 = vmatprep.subr.mxu0 0.0
    %102 = vmatpush1.msra.mxu0 %v55
    %103 = vmatprep.subr.mxu0 0.0
    %104 = vmatpush1.msra.mxu0 %v54
    %105 = vmatprep.subr.mxu0 0.0
    %106 = vmatpush1.msra.mxu0 %v53
    %107 = vmatprep.subr.mxu0 0.0
    %108 = vmatpush1.msra.mxu0 %v52
    %109 = vmatprep.subr.mxu0 0.0
    %110 = vmatpush1.msra.mxu0 %v51
    %111 = vmatprep.subr.mxu0 0.0
    %112 = vmatpush1.msra.mxu0 %v50
    %113 = vmatprep.subr.mxu0 0.0
    %114 = vmatpush2.msra.mxu0 0.0
    %115 = vmatprep.subr.mxu0 0.0
    %116 = vmatpush2.msra.mxu0 0.0
    %117 = vmatprep.subr.mxu0 0.0
    %118 = vmatpush2.msra.mxu0 0.0
    %119 = vmatprep.subr.mxu0 0.0
    %120 = vmatpush2.msra.mxu0 0.0
    %121 = vmatprep.subr.mxu0 0.0
    %122 = vmatpush2.msra.mxu0 0.0
    %123 = vmatprep.subr.mxu0 0.0
    %124 = vmatpush2.msra.mxu0 0.0
    %125 = vmatprep.subr.mxu0 0.0
    %126 = vmatpush2.msra.mxu0 0.0
    %127 = vmatprep.subr.mxu0 0.0
    %128 = vmatpush2.msra.mxu0 0.0
    %129 = vmatprep.subr.mxu0 0.0
    %130 = vmatpush2.msra.mxu0 %v73
    %131 = vmatprep.subr.mxu0 0.0
    %132 = vmatpush2.msra.mxu0 %v72
    %133 = vmatprep.subr.mxu0 0.0
    %134 = vmatpush2.msra.mxu0 %v71
    %135 = vmatprep.subr.mxu0 0.0
    %136 = vmatpush2.msra.mxu0 %v70
    %137 = vmatprep.subr.mxu0 0.0
    %138 = vmatpush2.msra.mxu0 %v69
    %139 = vmatprep.subr.mxu0 0.0
    %140 = vmatpush2.msra.mxu0 %v68
    %141 = vmatprep.subr.mxu0 0.0
    %142 = vmatpush2.msra.mxu0 %v67
    %143 = vmatprep.subr.mxu0 0.0
    %144 = vmatpush2.msra.mxu0 %v66
    %145 = vmatprep.mubr.f32.mxu0 %v76
    %146 = vmatmul.mubr.f32.gmra.mxu0 %v46
    %v147 = vpop.f32.mrf.mxu0
    %v148 = vadd.f32 0.0, %v147
    %v149 = vpop.f32.mrf.mxu0
    %150 = vmatprep.mubr.f32.mxu0 %v79
    %151 = vmatmul.mubr.f32.gmra.mxu0 %v48
    %v152 = vpop.f32.mrf.mxu0
    %v153 = vadd.f32 0.0, %v152
    %v154 = vpop.f32.mrf.mxu0
    %155 = vdwg.mxu0
    %v156 = vld [vmem:[%s2] sm:$0xff]
    %v157 = vld [vmem:[%s2 + $0x8] sm:$0xff]
    %v158 = vld [vmem:[%s2 + $0x10] sm:$0xff]
    %v159 = vld [vmem:[%s2 + $0x18] sm:$0xff]
    %v160 = vld [vmem:[%s2 + $0x20] sm:$0xff]
    %v161 = vld [vmem:[%s2 + $0x28] sm:$0xff]
    %v162 = vld [vmem:[%s2 + $0x30] sm:$0xff]
    %v163 = vld [vmem:[%s2 + $0x38] sm:$0xff]
    %v164 = vld [vmem:[%s4] sm:$0x1]
    %v166 = vlaneseq
    %v167 = vshrl.u32 %v166, 7
    %v168 = vsub.s32 0, %v167
    %v169 = vrot.slane %v164, %v168
    %v172 = vsel %vm74, %v148, 0
    %v175 = vsel %vm74, %v153, 0
    %177 = vmatprep.subr.mxu0 0.0
    %178 = vmatpush1.msra.mxu0 0.0
    %179 = vmatprep.subr.mxu0 0.0
    %180 = vmatpush1.msra.mxu0 0.0
    %181 = vmatprep.subr.mxu0 0.0
    %182 = vmatpush1.msra.mxu0 0.0
    %183 = vmatprep.subr.mxu0 0.0
    %184 = vmatpush1.msra.mxu0 0.0
    %185 = vmatprep.subr.mxu0 0.0
    %186 = vmatpush1.msra.mxu0 0.0
    %187 = vmatprep.subr.mxu0 0.0
    %188 = vmatpush1.msra.mxu0 0.0
    %189 = vmatprep.subr.mxu0 0.0
    %190 = vmatpush1.msra.mxu0 0.0
    %191 = vmatprep.subr.mxu0 0.0
    %192 = vmatpush1.msra.mxu0 0.0
    %193 = vmatprep.subr.mxu0 0.0
    %194 = vmatpush1.msra.mxu0 %v163
    %195 = vmatprep.subr.mxu0 0.0
    %196 = vmatpush1.msra.mxu0 %v162
    %197 = vmatprep.subr.mxu0 0.0
    %198 = vmatpush1.msra.mxu0 %v161
    %199 = vmatprep.subr.mxu0 0.0
    %200 = vmatpush1.msra.mxu0 %v160
    %201 = vmatprep.subr.mxu0 0.0
    %202 = vmatpush1.msra.mxu0 %v159
    %203 = vmatprep.subr.mxu0 0.0
    %204 = vmatpush1.msra.mxu0 %v158
    %205 = vmatprep.subr.mxu0 0.0
    %206 = vmatpush1.msra.mxu0 %v157
    %207 = vmatprep.subr.mxu0 0.0
    %208 = vmatpush1.msra.mxu0 %v156
    %209 = vmatprep.subr.mxu0 0.0
    %210 = vmatpush2.msra.mxu0 0.0
    %211 = vmatprep.subr.mxu0 0.0
    %212 = vmatpush2.msra.mxu0 0.0
    %213 = vmatprep.subr.mxu0 0.0
    %214 = vmatpush2.msra.mxu0 0.0
    %215 = vmatprep.subr.mxu0 0.0
    %216 = vmatpush2.msra.mxu0 0.0
    %217 = vmatprep.subr.mxu0 0.0
    %218 = vmatpush2.msra.mxu0 0.0
    %219 = vmatprep.subr.mxu0 0.0
    %220 = vmatpush2.msra.mxu0 0.0
    %221 = vmatprep.subr.mxu0 0.0
    %222 = vmatpush2.msra.mxu0 0.0
    %223 = vmatprep.subr.mxu0 0.0
    %224 = vmatpush2.msra.mxu0 0.0
    %225 = vmatprep.subr.mxu0 0.0
    %226 = vmatpush2.msra.mxu0 0.0
    %227 = vmatprep.subr.mxu0 0.0
    %228 = vmatpush2.msra.mxu0 0.0
    %229 = vmatprep.subr.mxu0 0.0
    %230 = vmatpush2.msra.mxu0 0.0
    %231 = vmatprep.subr.mxu0 0.0
    %232 = vmatpush2.msra.mxu0 0.0
    %233 = vmatprep.subr.mxu0 0.0
    %234 = vmatpush2.msra.mxu0 0.0
    %235 = vmatprep.subr.mxu0 0.0
    %236 = vmatpush2.msra.mxu0 0.0
    %237 = vmatprep.subr.mxu0 0.0
    %238 = vmatpush2.msra.mxu0 0.0
    %239 = vmatprep.subr.mxu0 0.0
    %240 = vmatpush2.msra.mxu0 0.0
    %241 = vmatprep.mubr.f32.mxu0 0.0
    %242 = vmatmul.mubr.f32.gmra.mxu0 %v172
    %v243 = vpop.f32.mrf.mxu0
    %v244 = vadd.f32 %v169, %v243
    %v245 = vpop.f32.mrf.mxu0
    %246 = vmatprep.mubr.f32.mxu0 0.0
    %247 = vmatmul.mubr.f32.gmra.mxu0 %v175
    %v248 = vpop.f32.mrf.mxu0
    %v249 = vadd.f32 %v169, %v248
    %v250 = vpop.f32.mrf.mxu0
    %251 = vdwg.mxu0
    %v252 = vld [vmem:[%s3] sm:$0xff]
    %v253 = vld [vmem:[%s3 + $0x8] sm:$0xff]
    %v254 = vld [vmem:[%s3 + $0x10] sm:$0xff]
    %v255 = vld [vmem:[%s3 + $0x18] sm:$0xff]
    %vm256 = vcmask 261120
    %v258 = vsel %vm256, 0.0, 0
    %260 = vmatprep.subr.mxu0 0.0
    %261 = vmatpush1.msra.mxu0 0.0
    %262 = vmatprep.subr.mxu0 0.0
    %263 = vmatpush1.msra.mxu0 0.0
    %264 = vmatprep.subr.mxu0 0.0
    %265 = vmatpush1.msra.mxu0 0.0
    %266 = vmatprep.subr.mxu0 0.0
    %267 = vmatpush1.msra.mxu0 0.0
    %268 = vmatprep.subr.mxu0 0.0
    %269 = vmatpush1.msra.mxu0 0.0
    %270 = vmatprep.subr.mxu0 0.0
    %271 = vmatpush1.msra.mxu0 0.0
    %272 = vmatprep.subr.mxu0 0.0
    %273 = vmatpush1.msra.mxu0 0.0
    %274 = vmatprep.subr.mxu0 0.0
    %275 = vmatpush1.msra.mxu0 0.0
    %276 = vmatprep.subr.mxu0 0.0
    %277 = vmatpush1.msra.mxu0 0.0
    %278 = vmatprep.subr.mxu0 0.0
    %279 = vmatpush1.msra.mxu0 0.0
    %280 = vmatprep.subr.mxu0 0.0
    %281 = vmatpush1.msra.mxu0 0.0
    %282 = vmatprep.subr.mxu0 0.0
    %283 = vmatpush1.msra.mxu0 0.0
    %284 = vmatprep.subr.mxu0 0.0
    %285 = vmatpush1.msra.mxu0 %v255
    %286 = vmatprep.subr.mxu0 0.0
    %287 = vmatpush1.msra.mxu0 %v254
    %288 = vmatprep.subr.mxu0 0.0
    %289 = vmatpush1.msra.mxu0 %v253
    %290 = vmatprep.subr.mxu0 0.0
    %291 = vmatpush1.msra.mxu0 %v252
    %292 = vmatprep.subr.mxu0 0.0
    %293 = vmatpush2.msra.mxu0 0.0
    %294 = vmatprep.subr.mxu0 0.0
    %295 = vmatpush2.msra.mxu0 0.0
    %296 = vmatprep.subr.mxu0 0.0
    %297 = vmatpush2.msra.mxu0 0.0
    %298 = vmatprep.subr.mxu0 0.0
    %299 = vmatpush2.msra.mxu0 0.0
    %300 = vmatprep.subr.mxu0 0.0
    %301 = vmatpush2.msra.mxu0 0.0
    %302 = vmatprep.subr.mxu0 0.0
    %303 = vmatpush2.msra.mxu0 0.0
    %304 = vmatprep.subr.mxu0 0.0
    %305 = vmatpush2.msra.mxu0 0.0
    %306 = vmatprep.subr.mxu0 0.0
    %307 = vmatpush2.msra.mxu0 0.0
    %308 = vmatprep.subr.mxu0 0.0
    %309 = vmatpush2.msra.mxu0 0.0
    %310 = vmatprep.subr.mxu0 0.0
    %311 = vmatpush2.msra.mxu0 0.0
    %312 = vmatprep.subr.mxu0 0.0
    %313 = vmatpush2.msra.mxu0 0.0
    %314 = vmatprep.subr.mxu0 0.0
    %315 = vmatpush2.msra.mxu0 0.0
    %316 = vmatprep.subr.mxu0 0.0
    %317 = vmatpush2.msra.mxu0 0.0
    %318 = vmatprep.subr.mxu0 0.0
    %319 = vmatpush2.msra.mxu0 0.0
    %320 = vmatprep.subr.mxu0 0.0
    %321 = vmatpush2.msra.mxu0 0.0
    %322 = vmatprep.subr.mxu0 0.0
    %323 = vmatpush2.msra.mxu0 0.0
    %324 = vmatprep.mubr.f32.mxu0 0.0
    %325 = vmatmul.mubr.f32.gmra.mxu0 %v258
    %v326 = vpop.f32.mrf.mxu0
    %v327 = vadd.f32 0.0, %v326
    %v328 = vpop.f32.mrf.mxu0
    %329 = vdwg.mxu0
    %v330 = vadd.f32 %v244, %v327
    %v331 = vxor.u32 %v330, 2147483648
    %v332 = vmul.f32 %v331, 1.442695
    %v333 = vpow.pop %v332
    %v334 = vadd.f32 %v333, 1.0
    %v335 = vrcp.pop %v334
    %v336 = vmul.f32 1.0, %v335
    %v337 = vtanh.pop %v330
    %v338 = vmul.f32 %v336, 0.0
    %340 = vrot.lane.b32.xlu0 %v337, 64
    %v341 = vpop.permute.xlu0 %340
    %v343 = vmul.f32 %v336, %v341
    %345 = vrot.lane.b32.xlu0 %v343, 32
    %v346 = vpop.permute.xlu0 %345
    %v348 = vadd.f32 %v338, %v346
    %v349 = vtanh.pop %v348
    %351 = vrot.lane.b32.xlu0 %v349, 64
    %v352 = vpop.permute.xlu0 %351
    %v354 = vmul.f32 %v336, %v352
    %356 = vrot.lane.b32.xlu0 %v354, 32
    %v357 = vpop.permute.xlu0 %356
    %v358 = vsel %vm256, %v357, 0
    %360 = vmatprep.subr.mxu0 0.0
    %361 = vmatpush1.msra.mxu0 0.0
    %362 = vmatprep.subr.mxu0 0.0
    %363 = vmatpush1.msra.mxu0 0.0
    %364 = vmatprep.subr.mxu0 0.0
    %365 = vmatpush1.msra.mxu0 0.0
    %366 = vmatprep.subr.mxu0 0.0
    %367 = vmatpush1.msra.mxu0 0.0
    %368 = vmatprep.subr.mxu0 0.0
    %369 = vmatpush1.msra.mxu0 0.0
    %370 = vmatprep.subr.mxu0 0.0
    %371 = vmatpush1.msra.mxu0 0.0
    %372 = vmatprep.subr.mxu0 0.0
    %373 = vmatpush1.msra.mxu0 0.0
    %374 = vmatprep.subr.mxu0 0.0
    %375 = vmatpush1.msra.mxu0 0.0
    %376 = vmatprep.subr.mxu0 0.0
    %377 = vmatpush1.msra.mxu0 0.0
    %378 = vmatprep.subr.mxu0 0.0
    %379 = vmatpush1.msra.mxu0 0.0
    %380 = vmatprep.subr.mxu0 0.0
    %381 = vmatpush1.msra.mxu0 0.0
    %382 = vmatprep.subr.mxu0 0.0
    %383 = vmatpush1.msra.mxu0 0.0
    %384 = vmatprep.subr.mxu0 0.0
    %385 = vmatpush1.msra.mxu0 %v255
    %386 = vmatprep.subr.mxu0 0.0
    %387 = vmatpush1.msra.mxu0 %v254
    %388 = vmatprep.subr.mxu0 0.0
    %389 = vmatpush1.msra.mxu0 %v253
    %390 = vmatprep.subr.mxu0 0.0
    %391 = vmatpush1.msra.mxu0 %v252
    %392 = vmatprep.subr.mxu0 0.0
    %393 = vmatpush2.msra.mxu0 0.0
    %394 = vmatprep.subr.mxu0 0.0
    %395 = vmatpush2.msra.mxu0 0.0
    %396 = vmatprep.subr.mxu0 0.0
    %397 = vmatpush2.msra.mxu0 0.0
    %398 = vmatprep.subr.mxu0 0.0
    %399 = vmatpush2.msra.mxu0 0.0
    %400 = vmatprep.subr.mxu0 0.0
    %401 = vmatpush2.msra.mxu0 0.0
    %402 = vmatprep.subr.mxu0 0.0
    %403 = vmatpush2.msra.mxu0 0.0
    %404 = vmatprep.subr.mxu0 0.0
    %405 = vmatpush2.msra.mxu0 0.0
    %406 = vmatprep.subr.mxu0 0.0
    %407 = vmatpush2.msra.mxu0 0.0
    %408 = vmatprep.subr.mxu0 0.0
    %409 = vmatpush2.msra.mxu0 0.0
    %410 = vmatprep.subr.mxu0 0.0
    %411 = vmatpush2.msra.mxu0 0.0
    %412 = vmatprep.subr.mxu0 0.0
    %413 = vmatpush2.msra.mxu0 0.0
    %414 = vmatprep.subr.mxu0 0.0
    %415 = vmatpush2.msra.mxu0 0.0
    %416 = vmatprep.subr.mxu0 0.0
    %417 = vmatpush2.msra.mxu0 0.0
    %418 = vmatprep.subr.mxu0 0.0
    %419 = vmatpush2.msra.mxu0 0.0
    %420 = vmatprep.subr.mxu0 0.0
    %421 = vmatpush2.msra.mxu0 0.0
    %422 = vmatprep.subr.mxu0 0.0
    %423 = vmatpush2.msra.mxu0 0.0
    %424 = vmatprep.mubr.f32.mxu0 0.0
    %425 = vmatmul.mubr.f32.gmra.mxu0 %v358
    %v426 = vpop.f32.mrf.mxu0
    %v427 = vadd.f32 0.0, %v426
    %v428 = vpop.f32.mrf.mxu0
    %429 = vdwg.mxu0
    %v431 = vrot.slane %v427, 6
    %v433 = vadd.f32 %v244, %v431
    %v434 = vxor.u32 %v433, 2147483648
    %v435 = vmul.f32 %v434, 1.442695
    %v436 = vpow.pop %v435
    %v437 = vadd.f32 %v436, 1.0
    %v438 = vrcp.pop %v437
    %v439 = vmul.f32 1.0, %v438
    %v440 = vtanh.pop %v433
    %v442 = vrot.slane %v348, 6
    %v444 = vmul.f32 %v439, %v442
    %446 = vrot.lane.b32.xlu0 %v440, 64
    %v447 = vpop.permute.xlu0 %446
    %v449 = vmul.f32 %v439, %v447
    %451 = vrot.lane.b32.xlu0 %v449, 32
    %v452 = vpop.permute.xlu0 %451
    %v454 = vadd.f32 %v444, %v452
    %v455 = vtanh.pop %v454
    %457 = vrot.lane.b32.xlu0 %v455, 64
    %v458 = vpop.permute.xlu0 %457
    %v460 = vmul.f32 %v439, %v458
    %v462 = vrot.slane %v460, 2
    %463 = vrot.lane.b32.xlu0 %v462, 32
    %v464 = vpop.permute.xlu0 %463
    %v465 = vsel %vm256, %v464, 0
    %467 = vmatprep.subr.mxu0 0.0
    %468 = vmatpush1.msra.mxu0 0.0
    %469 = vmatprep.subr.mxu0 0.0
    %470 = vmatpush1.msra.mxu0 0.0
    %471 = vmatprep.subr.mxu0 0.0
    %472 = vmatpush1.msra.mxu0 0.0
    %473 = vmatprep.subr.mxu0 0.0
    %474 = vmatpush1.msra.mxu0 0.0
    %475 = vmatprep.subr.mxu0 0.0
    %476 = vmatpush1.msra.mxu0 0.0
    %477 = vmatprep.subr.mxu0 0.0
    %478 = vmatpush1.msra.mxu0 0.0
    %479 = vmatprep.subr.mxu0 0.0
    %480 = vmatpush1.msra.mxu0 0.0
    %481 = vmatprep.subr.mxu0 0.0
    %482 = vmatpush1.msra.mxu0 0.0
    %483 = vmatprep.subr.mxu0 0.0
    %484 = vmatpush1.msra.mxu0 0.0
    %485 = vmatprep.subr.mxu0 0.0
    %486 = vmatpush1.msra.mxu0 0.0
    %487 = vmatprep.subr.mxu0 0.0
    %488 = vmatpush1.msra.mxu0 0.0
    %489 = vmatprep.subr.mxu0 0.0
    %490 = vmatpush1.msra.mxu0 0.0
    %491 = vmatprep.subr.mxu0 0.0
    %492 = vmatpush1.msra.mxu0 %v255
    %493 = vmatprep.subr.mxu0 0.0
    %494 = vmatpush1.msra.mxu0 %v254
    %495 = vmatprep.subr.mxu0 0.0
    %496 = vmatpush1.msra.mxu0 %v253
    %497 = vmatprep.subr.mxu0 0.0
    %498 = vmatpush1.msra.mxu0 %v252
    %499 = vmatprep.subr.mxu0 0.0
    %500 = vmatpush2.msra.mxu0 0.0
    %501 = vmatprep.subr.mxu0 0.0
    %502 = vmatpush2.msra.mxu0 0.0
    %503 = vmatprep.subr.mxu0 0.0
    %504 = vmatpush2.msra.mxu0 0.0
    %505 = vmatprep.subr.mxu0 0.0
    %506 = vmatpush2.msra.mxu0 0.0
    %507 = vmatprep.subr.mxu0 0.0
    %508 = vmatpush2.msra.mxu0 0.0
    %509 = vmatprep.subr.mxu0 0.0
    %510 = vmatpush2.msra.mxu0 0.0
    %511 = vmatprep.subr.mxu0 0.0
    %512 = vmatpush2.msra.mxu0 0.0
    %513 = vmatprep.subr.mxu0 0.0
    %514 = vmatpush2.msra.mxu0 0.0
    %515 = vmatprep.subr.mxu0 0.0
    %516 = vmatpush2.msra.mxu0 0.0
    %517 = vmatprep.subr.mxu0 0.0
    %518 = vmatpush2.msra.mxu0 0.0
    %519 = vmatprep.subr.mxu0 0.0
    %520 = vmatpush2.msra.mxu0 0.0
    %521 = vmatprep.subr.mxu0 0.0
    %522 = vmatpush2.msra.mxu0 0.0
    %523 = vmatprep.subr.mxu0 0.0
    %524 = vmatpush2.msra.mxu0 0.0
    %525 = vmatprep.subr.mxu0 0.0
    %526 = vmatpush2.msra.mxu0 0.0
    %527 = vmatprep.subr.mxu0 0.0
    %528 = vmatpush2.msra.mxu0 0.0
    %529 = vmatprep.subr.mxu0 0.0
    %530 = vmatpush2.msra.mxu0 0.0
    %531 = vmatprep.mubr.f32.mxu0 0.0
    %532 = vmatmul.mubr.f32.gmra.mxu0 %v465
    %v533 = vpop.f32.mrf.mxu0
    %v534 = vadd.f32 0.0, %v533
    %v535 = vpop.f32.mrf.mxu0
    %536 = vdwg.mxu0
    %v538 = vrot.slane %v534, 4
    %v540 = vadd.f32 %v244, %v538
    %v541 = vxor.u32 %v540, 2147483648
    %v542 = vmul.f32 %v541, 1.442695
    %v543 = vpow.pop %v542
    %v544 = vadd.f32 %v543, 1.0
    %v545 = vrcp.pop %v544
    %v546 = vmul.f32 1.0, %v545
    %v547 = vtanh.pop %v540
    %v549 = vrot.slane %v454, 6
    %v551 = vmul.f32 %v546, %v549
    %553 = vrot.lane.b32.xlu0 %v547, 64
    %v554 = vpop.permute.xlu0 %553
    %v556 = vmul.f32 %v546, %v554
    %558 = vrot.lane.b32.xlu0 %v556, 32
    %v559 = vpop.permute.xlu0 %558
    %v561 = vadd.f32 %v551, %v559
    %v562 = vtanh.pop %v561
    %564 = vrot.lane.b32.xlu0 %v562, 64
    %v565 = vpop.permute.xlu0 %564
    %v567 = vmul.f32 %v546, %v565
    %v569 = vrot.slane %v567, 4
    %570 = vrot.lane.b32.xlu0 %v569, 32
    %v571 = vpop.permute.xlu0 %570
    %v572 = vsel %vm256, %v571, 0
    %574 = vmatprep.subr.mxu0 0.0
    %575 = vmatpush1.msra.mxu0 0.0
    %576 = vmatprep.subr.mxu0 0.0
    %577 = vmatpush1.msra.mxu0 0.0
    %578 = vmatprep.subr.mxu0 0.0
    %579 = vmatpush1.msra.mxu0 0.0
    %580 = vmatprep.subr.mxu0 0.0
    %581 = vmatpush1.msra.mxu0 0.0
    %582 = vmatprep.subr.mxu0 0.0
    %583 = vmatpush1.msra.mxu0 0.0
    %584 = vmatprep.subr.mxu0 0.0
    %585 = vmatpush1.msra.mxu0 0.0
    %586 = vmatprep.subr.mxu0 0.0
    %587 = vmatpush1.msra.mxu0 0.0
    %588 = vmatprep.subr.mxu0 0.0
    %589 = vmatpush1.msra.mxu0 0.0
    %590 = vmatprep.subr.mxu0 0.0
    %591 = vmatpush1.msra.mxu0 0.0
    %592 = vmatprep.subr.mxu0 0.0
    %593 = vmatpush1.msra.mxu0 0.0
    %594 = vmatprep.subr.mxu0 0.0
    %595 = vmatpush1.msra.mxu0 0.0
    %596 = vmatprep.subr.mxu0 0.0
    %597 = vmatpush1.msra.mxu0 0.0
    %598 = vmatprep.subr.mxu0 0.0
    %599 = vmatpush1.msra.mxu0 %v255
    %600 = vmatprep.subr.mxu0 0.0
    %601 = vmatpush1.msra.mxu0 %v254
    %602 = vmatprep.subr.mxu0 0.0
    %603 = vmatpush1.msra.mxu0 %v253
    %604 = vmatprep.subr.mxu0 0.0
    %605 = vmatpush1.msra.mxu0 %v252
    %606 = vmatprep.subr.mxu0 0.0
    %607 = vmatpush2.msra.mxu0 0.0
    %608 = vmatprep.subr.mxu0 0.0
    %609 = vmatpush2.msra.mxu0 0.0
    %610 = vmatprep.subr.mxu0 0.0
    %611 = vmatpush2.msra.mxu0 0.0
    %612 = vmatprep.subr.mxu0 0.0
    %613 = vmatpush2.msra.mxu0 0.0
    %614 = vmatprep.subr.mxu0 0.0
    %615 = vmatpush2.msra.mxu0 0.0
    %616 = vmatprep.subr.mxu0 0.0
    %617 = vmatpush2.msra.mxu0 0.0
    %618 = vmatprep.subr.mxu0 0.0
    %619 = vmatpush2.msra.mxu0 0.0
    %620 = vmatprep.subr.mxu0 0.0
    %621 = vmatpush2.msra.mxu0 0.0
    %622 = vmatprep.subr.mxu0 0.0
    %623 = vmatpush2.msra.mxu0 0.0
    %624 = vmatprep.subr.mxu0 0.0
    %625 = vmatpush2.msra.mxu0 0.0
    %626 = vmatprep.subr.mxu0 0.0
    %627 = vmatpush2.msra.mxu0 0.0
    %628 = vmatprep.subr.mxu0 0.0
    %629 = vmatpush2.msra.mxu0 0.0
    %630 = vmatprep.subr.mxu0 0.0
    %631 = vmatpush2.msra.mxu0 0.0
    %632 = vmatprep.subr.mxu0 0.0
    %633 = vmatpush2.msra.mxu0 0.0
    %634 = vmatprep.subr.mxu0 0.0
    %635 = vmatpush2.msra.mxu0 0.0
    %636 = vmatprep.subr.mxu0 0.0
    %637 = vmatpush2.msra.mxu0 0.0
    %638 = vmatprep.mubr.f32.mxu0 0.0
    %639 = vmatmul.mubr.f32.gmra.mxu0 %v572
    %v640 = vpop.f32.mrf.mxu0
    %v641 = vadd.f32 0.0, %v640
    %v642 = vpop.f32.mrf.mxu0
    %643 = vdwg.mxu0
    %v645 = vrot.slane %v641, 2
    %v647 = vadd.f32 %v244, %v645
    %v648 = vxor.u32 %v647, 2147483648
    %v649 = vmul.f32 %v648, 1.442695
    %v650 = vpow.pop %v649
    %v651 = vadd.f32 %v650, 1.0
    %v652 = vrcp.pop %v651
    %v653 = vmul.f32 1.0, %v652
    %v654 = vtanh.pop %v647
    %v656 = vrot.slane %v561, 6
    %v658 = vmul.f32 %v653, %v656
    %660 = vrot.lane.b32.xlu0 %v654, 64
    %v661 = vpop.permute.xlu0 %660
    %v663 = vmul.f32 %v653, %v661
    %665 = vrot.lane.b32.xlu0 %v663, 32
    %v666 = vpop.permute.xlu0 %665
    %v668 = vadd.f32 %v658, %v666
    %v669 = vtanh.pop %v668
    %671 = vrot.lane.b32.xlu0 %v669, 64
    %v672 = vpop.permute.xlu0 %671
    %v674 = vmul.f32 %v653, %v672
    %v676 = vrot.slane %v674, 6
    %677 = vrot.lane.b32.xlu0 %v676, 32
    %v678 = vpop.permute.xlu0 %677
    %v679 = vsel %vm256, %v678, 0
    %681 = vmatprep.subr.mxu0 0.0
    %682 = vmatpush1.msra.mxu0 0.0
    %683 = vmatprep.subr.mxu0 0.0
    %684 = vmatpush1.msra.mxu0 0.0
    %685 = vmatprep.subr.mxu0 0.0
    %686 = vmatpush1.msra.mxu0 0.0
    %687 = vmatprep.subr.mxu0 0.0
    %688 = vmatpush1.msra.mxu0 0.0
    %689 = vmatprep.subr.mxu0 0.0
    %690 = vmatpush1.msra.mxu0 0.0
    %691 = vmatprep.subr.mxu0 0.0
    %692 = vmatpush1.msra.mxu0 0.0
    %693 = vmatprep.subr.mxu0 0.0
    %694 = vmatpush1.msra.mxu0 0.0
    %695 = vmatprep.subr.mxu0 0.0
    %696 = vmatpush1.msra.mxu0 0.0
    %697 = vmatprep.subr.mxu0 0.0
    %698 = vmatpush1.msra.mxu0 0.0
    %699 = vmatprep.subr.mxu0 0.0
    %700 = vmatpush1.msra.mxu0 0.0
    %701 = vmatprep.subr.mxu0 0.0
    %702 = vmatpush1.msra.mxu0 0.0
    %703 = vmatprep.subr.mxu0 0.0
    %704 = vmatpush1.msra.mxu0 0.0
    %705 = vmatprep.subr.mxu0 0.0
    %706 = vmatpush1.msra.mxu0 %v255
    %707 = vmatprep.subr.mxu0 0.0
    %708 = vmatpush1.msra.mxu0 %v254
    %709 = vmatprep.subr.mxu0 0.0
    %710 = vmatpush1.msra.mxu0 %v253
    %711 = vmatprep.subr.mxu0 0.0
    %712 = vmatpush1.msra.mxu0 %v252
    %713 = vmatprep.subr.mxu0 0.0
    %714 = vmatpush2.msra.mxu0 0.0
    %715 = vmatprep.subr.mxu0 0.0
    %716 = vmatpush2.msra.mxu0 0.0
    %717 = vmatprep.subr.mxu0 0.0
    %718 = vmatpush2.msra.mxu0 0.0
    %719 = vmatprep.subr.mxu0 0.0
    %720 = vmatpush2.msra.mxu0 0.0
    %721 = vmatprep.subr.mxu0 0.0
    %722 = vmatpush2.msra.mxu0 0.0
    %723 = vmatprep.subr.mxu0 0.0
    %724 = vmatpush2.msra.mxu0 0.0
    %725 = vmatprep.subr.mxu0 0.0
    %726 = vmatpush2.msra.mxu0 0.0
    %727 = vmatprep.subr.mxu0 0.0
    %728 = vmatpush2.msra.mxu0 0.0
    %729 = vmatprep.subr.mxu0 0.0
    %730 = vmatpush2.msra.mxu0 0.0
    %731 = vmatprep.subr.mxu0 0.0
    %732 = vmatpush2.msra.mxu0 0.0
    %733 = vmatprep.subr.mxu0 0.0
    %734 = vmatpush2.msra.mxu0 0.0
    %735 = vmatprep.subr.mxu0 0.0
    %736 = vmatpush2.msra.mxu0 0.0
    %737 = vmatprep.subr.mxu0 0.0
    %738 = vmatpush2.msra.mxu0 0.0
    %739 = vmatprep.subr.mxu0 0.0
    %740 = vmatpush2.msra.mxu0 0.0
    %741 = vmatprep.subr.mxu0 0.0
    %742 = vmatpush2.msra.mxu0 0.0
    %743 = vmatprep.subr.mxu0 0.0
    %744 = vmatpush2.msra.mxu0 0.0
    %745 = vmatprep.mubr.f32.mxu0 0.0
    %746 = vmatmul.mubr.f32.gmra.mxu0 %v679
    %v747 = vpop.f32.mrf.mxu0
    %v748 = vadd.f32 0.0, %v747
    %v749 = vpop.f32.mrf.mxu0
    %750 = vdwg.mxu0
    %v751 = vadd.f32 %v249, %v748
    %v752 = vxor.u32 %v751, 2147483648
    %v753 = vmul.f32 %v752, 1.442695
    %v754 = vpow.pop %v753
    %v755 = vadd.f32 %v754, 1.0
    %v756 = vrcp.pop %v755
    %v757 = vmul.f32 1.0, %v756
    %v758 = vtanh.pop %v751
    %v760 = vrot.slane %v668, 6
    %v762 = vmul.f32 %v757, %v760
    %764 = vrot.lane.b32.xlu0 %v758, 64
    %v765 = vpop.permute.xlu0 %764
    %v767 = vmul.f32 %v757, %v765
    %769 = vrot.lane.b32.xlu0 %v767, 32
    %v770 = vpop.permute.xlu0 %769
    %v772 = vadd.f32 %v762, %v770
    %v773 = vtanh.pop %v772
    %775 = vrot.lane.b32.xlu0 %v773, 64
    %v776 = vpop.permute.xlu0 %775
    %v778 = vmul.f32 %v757, %v776
    %780 = vrot.lane.b32.xlu0 %v778, 32
    %v781 = vpop.permute.xlu0 %780
    %v782 = vsel %vm256, %v781, 0
    %784 = vmatprep.subr.mxu0 0.0
    %785 = vmatpush1.msra.mxu0 0.0
    %786 = vmatprep.subr.mxu0 0.0
    %787 = vmatpush1.msra.mxu0 0.0
    %788 = vmatprep.subr.mxu0 0.0
    %789 = vmatpush1.msra.mxu0 0.0
    %790 = vmatprep.subr.mxu0 0.0
    %791 = vmatpush1.msra.mxu0 0.0
    %792 = vmatprep.subr.mxu0 0.0
    %793 = vmatpush1.msra.mxu0 0.0
    %794 = vmatprep.subr.mxu0 0.0
    %795 = vmatpush1.msra.mxu0 0.0
    %796 = vmatprep.subr.mxu0 0.0
    %797 = vmatpush1.msra.mxu0 0.0
    %798 = vmatprep.subr.mxu0 0.0
    %799 = vmatpush1.msra.mxu0 0.0
    %800 = vmatprep.subr.mxu0 0.0
    %801 = vmatpush1.msra.mxu0 0.0
    %802 = vmatprep.subr.mxu0 0.0
    %803 = vmatpush1.msra.mxu0 0.0
    %804 = vmatprep.subr.mxu0 0.0
    %805 = vmatpush1.msra.mxu0 0.0
    %806 = vmatprep.subr.mxu0 0.0
    %807 = vmatpush1.msra.mxu0 0.0
    %808 = vmatprep.subr.mxu0 0.0
    %809 = vmatpush1.msra.mxu0 %v255
    %810 = vmatprep.subr.mxu0 0.0
    %811 = vmatpush1.msra.mxu0 %v254
    %812 = vmatprep.subr.mxu0 0.0
    %813 = vmatpush1.msra.mxu0 %v253
    %814 = vmatprep.subr.mxu0 0.0
    %815 = vmatpush1.msra.mxu0 %v252
    %816 = vmatprep.subr.mxu0 0.0
    %817 = vmatpush2.msra.mxu0 0.0
    %818 = vmatprep.subr.mxu0 0.0
    %819 = vmatpush2.msra.mxu0 0.0
    %820 = vmatprep.subr.mxu0 0.0
    %821 = vmatpush2.msra.mxu0 0.0
    %822 = vmatprep.subr.mxu0 0.0
    %823 = vmatpush2.msra.mxu0 0.0
    %824 = vmatprep.subr.mxu0 0.0
    %825 = vmatpush2.msra.mxu0 0.0
    %826 = vmatprep.subr.mxu0 0.0
    %827 = vmatpush2.msra.mxu0 0.0
    %828 = vmatprep.subr.mxu0 0.0
    %829 = vmatpush2.msra.mxu0 0.0
    %830 = vmatprep.subr.mxu0 0.0
    %831 = vmatpush2.msra.mxu0 0.0
    %832 = vmatprep.subr.mxu0 0.0
    %833 = vmatpush2.msra.mxu0 0.0
    %834 = vmatprep.subr.mxu0 0.0
    %835 = vmatpush2.msra.mxu0 0.0
    %836 = vmatprep.subr.mxu0 0.0
    %837 = vmatpush2.msra.mxu0 0.0
    %838 = vmatprep.subr.mxu0 0.0
    %839 = vmatpush2.msra.mxu0 0.0
    %840 = vmatprep.subr.mxu0 0.0
    %841 = vmatpush2.msra.mxu0 0.0
    %842 = vmatprep.subr.mxu0 0.0
    %843 = vmatpush2.msra.mxu0 0.0
    %844 = vmatprep.subr.mxu0 0.0
    %845 = vmatpush2.msra.mxu0 0.0
    %846 = vmatprep.subr.mxu0 0.0
    %847 = vmatpush2.msra.mxu0 0.0
    %848 = vmatprep.mubr.f32.mxu0 0.0
    %849 = vmatmul.mubr.f32.gmra.mxu0 %v782
    %v850 = vpop.f32.mrf.mxu0
    %v851 = vadd.f32 0.0, %v850
    %v852 = vpop.f32.mrf.mxu0
    %853 = vdwg.mxu0
    %v855 = vrot.slane %v851, 6
    %v857 = vadd.f32 %v249, %v855
    %v858 = vxor.u32 %v857, 2147483648
    %v859 = vmul.f32 %v858, 1.442695
    %v860 = vpow.pop %v859
    %v861 = vadd.f32 %v860, 1.0
    %v862 = vrcp.pop %v861
    %v863 = vmul.f32 1.0, %v862
    %v864 = vtanh.pop %v857
    %v866 = vrot.slane %v772, 6
    %v868 = vmul.f32 %v863, %v866
    %870 = vrot.lane.b32.xlu0 %v864, 64
    %v871 = vpop.permute.xlu0 %870
    %v873 = vmul.f32 %v863, %v871
    %875 = vrot.lane.b32.xlu0 %v873, 32
    %v876 = vpop.permute.xlu0 %875
    %v878 = vadd.f32 %v868, %v876
    %v879 = vtanh.pop %v878
    %881 = vrot.lane.b32.xlu0 %v879, 64
    %v882 = vpop.permute.xlu0 %881
    %v884 = vmul.f32 %v863, %v882
    %v886 = vrot.slane %v884, 2
    %887 = vrot.lane.b32.xlu0 %v886, 32
    %v888 = vpop.permute.xlu0 %887
    %v889 = vsel %vm256, %v888, 0
    %891 = vmatprep.subr.mxu0 0.0
    %892 = vmatpush1.msra.mxu0 0.0
    %893 = vmatprep.subr.mxu0 0.0
    %894 = vmatpush1.msra.mxu0 0.0
    %895 = vmatprep.subr.mxu0 0.0
    %896 = vmatpush1.msra.mxu0 0.0
    %897 = vmatprep.subr.mxu0 0.0
    %898 = vmatpush1.msra.mxu0 0.0
    %899 = vmatprep.subr.mxu0 0.0
    %900 = vmatpush1.msra.mxu0 0.0
    %901 = vmatprep.subr.mxu0 0.0
    %902 = vmatpush1.msra.mxu0 0.0
    %903 = vmatprep.subr.mxu0 0.0
    %904 = vmatpush1.msra.mxu0 0.0
    %905 = vmatprep.subr.mxu0 0.0
    %906 = vmatpush1.msra.mxu0 0.0
    %907 = vmatprep.subr.mxu0 0.0
    %908 = vmatpush1.msra.mxu0 0.0
    %909 = vmatprep.subr.mxu0 0.0
    %910 = vmatpush1.msra.mxu0 0.0
    %911 = vmatprep.subr.mxu0 0.0
    %912 = vmatpush1.msra.mxu0 0.0
    %913 = vmatprep.subr.mxu0 0.0
    %914 = vmatpush1.msra.mxu0 0.0
    %915 = vmatprep.subr.mxu0 0.0
    %916 = vmatpush1.msra.mxu0 %v255
    %917 = vmatprep.subr.mxu0 0.0
    %918 = vmatpush1.msra.mxu0 %v254
    %919 = vmatprep.subr.mxu0 0.0
    %920 = vmatpush1.msra.mxu0 %v253
    %921 = vmatprep.subr.mxu0 0.0
    %922 = vmatpush1.msra.mxu0 %v252
    %923 = vmatprep.subr.mxu0 0.0
    %924 = vmatpush2.msra.mxu0 0.0
    %925 = vmatprep.subr.mxu0 0.0
    %926 = vmatpush2.msra.mxu0 0.0
    %927 = vmatprep.subr.mxu0 0.0
    %928 = vmatpush2.msra.mxu0 0.0
    %929 = vmatprep.subr.mxu0 0.0
    %930 = vmatpush2.msra.mxu0 0.0
    %931 = vmatprep.subr.mxu0 0.0
    %932 = vmatpush2.msra.mxu0 0.0
    %933 = vmatprep.subr.mxu0 0.0
    %934 = vmatpush2.msra.mxu0 0.0
    %935 = vmatprep.subr.mxu0 0.0
    %936 = vmatpush2.msra.mxu0 0.0
    %937 = vmatprep.subr.mxu0 0.0
    %938 = vmatpush2.msra.mxu0 0.0
    %939 = vmatprep.subr.mxu0 0.0
    %940 = vmatpush2.msra.mxu0 0.0
    %941 = vmatprep.subr.mxu0 0.0
    %942 = vmatpush2.msra.mxu0 0.0
    %943 = vmatprep.subr.mxu0 0.0
    %944 = vmatpush2.msra.mxu0 0.0
    %945 = vmatprep.subr.mxu0 0.0
    %946 = vmatpush2.msra.mxu0 0.0
    %947 = vmatprep.subr.mxu0 0.0
    %948 = vmatpush2.msra.mxu0 0.0
    %949 = vmatprep.subr.mxu0 0.0
    %950 = vmatpush2.msra.mxu0 0.0
    %951 = vmatprep.subr.mxu0 0.0
    %952 = vmatpush2.msra.mxu0 0.0
    %953 = vmatprep.subr.mxu0 0.0
    %954 = vmatpush2.msra.mxu0 0.0
    %955 = vmatprep.mubr.f32.mxu0 0.0
    %956 = vmatmul.mubr.f32.gmra.mxu0 %v889
    %v957 = vpop.f32.mrf.mxu0
    %v958 = vadd.f32 0.0, %v957
    %v959 = vpop.f32.mrf.mxu0
    %960 = vdwg.mxu0
    %v962 = vrot.slane %v958, 4
    %v964 = vadd.f32 %v249, %v962
    %v965 = vxor.u32 %v964, 2147483648
    %v966 = vmul.f32 %v965, 1.442695
    %v967 = vpow.pop %v966
    %v968 = vadd.f32 %v967, 1.0
    %v969 = vrcp.pop %v968
    %v970 = vmul.f32 1.0, %v969
    %v971 = vtanh.pop %v964
    %v973 = vrot.slane %v878, 6
    %v975 = vmul.f32 %v970, %v973
    %977 = vrot.lane.b32.xlu0 %v971, 64
    %v978 = vpop.permute.xlu0 %977
    %v980 = vmul.f32 %v970, %v978
    %982 = vrot.lane.b32.xlu0 %v980, 32
    %v983 = vpop.permute.xlu0 %982
    %v985 = vadd.f32 %v975, %v983
    %v986 = vtanh.pop %v985
    %988 = vrot.lane.b32.xlu0 %v986, 64
    %v989 = vpop.permute.xlu0 %988
    %v991 = vmul.f32 %v970, %v989
    %v993 = vrot.slane %v991, 4
    %994 = vrot.lane.b32.xlu0 %v993, 32
    %v995 = vpop.permute.xlu0 %994
    %v996 = vsel %vm256, %v995, 0
    %998 = vmatprep.subr.mxu0 0.0
    %999 = vmatpush1.msra.mxu0 0.0
    %1000 = vmatprep.subr.mxu0 0.0
    %1001 = vmatpush1.msra.mxu0 0.0
    %1002 = vmatprep.subr.mxu0 0.0
    %1003 = vmatpush1.msra.mxu0 0.0
    %1004 = vmatprep.subr.mxu0 0.0
    %1005 = vmatpush1.msra.mxu0 0.0
    %1006 = vmatprep.subr.mxu0 0.0
    %1007 = vmatpush1.msra.mxu0 0.0
    %1008 = vmatprep.subr.mxu0 0.0
    %1009 = vmatpush1.msra.mxu0 0.0
    %1010 = vmatprep.subr.mxu0 0.0
    %1011 = vmatpush1.msra.mxu0 0.0
    %1012 = vmatprep.subr.mxu0 0.0
    %1013 = vmatpush1.msra.mxu0 0.0
    %1014 = vmatprep.subr.mxu0 0.0
    %1015 = vmatpush1.msra.mxu0 0.0
    %1016 = vmatprep.subr.mxu0 0.0
    %1017 = vmatpush1.msra.mxu0 0.0
    %1018 = vmatprep.subr.mxu0 0.0
    %1019 = vmatpush1.msra.mxu0 0.0
    %1020 = vmatprep.subr.mxu0 0.0
    %1021 = vmatpush1.msra.mxu0 0.0
    %1022 = vmatprep.subr.mxu0 0.0
    %1023 = vmatpush1.msra.mxu0 %v255
    %1024 = vmatprep.subr.mxu0 0.0
    %1025 = vmatpush1.msra.mxu0 %v254
    %1026 = vmatprep.subr.mxu0 0.0
    %1027 = vmatpush1.msra.mxu0 %v253
    %1028 = vmatprep.subr.mxu0 0.0
    %1029 = vmatpush1.msra.mxu0 %v252
    %1030 = vmatprep.subr.mxu0 0.0
    %1031 = vmatpush2.msra.mxu0 0.0
    %1032 = vmatprep.subr.mxu0 0.0
    %1033 = vmatpush2.msra.mxu0 0.0
    %1034 = vmatprep.subr.mxu0 0.0
    %1035 = vmatpush2.msra.mxu0 0.0
    %1036 = vmatprep.subr.mxu0 0.0
    %1037 = vmatpush2.msra.mxu0 0.0
    %1038 = vmatprep.subr.mxu0 0.0
    %1039 = vmatpush2.msra.mxu0 0.0
    %1040 = vmatprep.subr.mxu0 0.0
    %1041 = vmatpush2.msra.mxu0 0.0
    %1042 = vmatprep.subr.mxu0 0.0
    %1043 = vmatpush2.msra.mxu0 0.0
    %1044 = vmatprep.subr.mxu0 0.0
    %1045 = vmatpush2.msra.mxu0 0.0
    %1046 = vmatprep.subr.mxu0 0.0
    %1047 = vmatpush2.msra.mxu0 0.0
    %1048 = vmatprep.subr.mxu0 0.0
    %1049 = vmatpush2.msra.mxu0 0.0
    %1050 = vmatprep.subr.mxu0 0.0
    %1051 = vmatpush2.msra.mxu0 0.0
    %1052 = vmatprep.subr.mxu0 0.0
    %1053 = vmatpush2.msra.mxu0 0.0
    %1054 = vmatprep.subr.mxu0 0.0
    %1055 = vmatpush2.msra.mxu0 0.0
    %1056 = vmatprep.subr.mxu0 0.0
    %1057 = vmatpush2.msra.mxu0 0.0
    %1058 = vmatprep.subr.mxu0 0.0
    %1059 = vmatpush2.msra.mxu0 0.0
    %1060 = vmatprep.subr.mxu0 0.0
    %1061 = vmatpush2.msra.mxu0 0.0
    %1062 = vmatprep.mubr.f32.mxu0 0.0
    %1063 = vmatmul.mubr.f32.gmra.mxu0 %v996
    %v1064 = vpop.f32.mrf.mxu0
    %v1065 = vadd.f32 0.0, %v1064
    %v1066 = vpop.f32.mrf.mxu0
    %1067 = vdwg.mxu0
    %v1069 = vrot.slane %v1065, 2
    %v1071 = vadd.f32 %v249, %v1069
    %v1072 = vxor.u32 %v1071, 2147483648
    %v1073 = vmul.f32 %v1072, 1.442695
    %v1074 = vpow.pop %v1073
    %v1075 = vadd.f32 %v1074, 1.0
    %v1076 = vrcp.pop %v1075
    %v1077 = vmul.f32 1.0, %v1076
    %v1078 = vtanh.pop %v1071
    %v1080 = vrot.slane %v985, 6
    %v1082 = vmul.f32 %v1077, %v1080
    %1084 = vrot.lane.b32.xlu0 %v1078, 64
    %v1085 = vpop.permute.xlu0 %1084
    %v1087 = vmul.f32 %v1077, %v1085
    %1089 = vrot.lane.b32.xlu0 %v1087, 32
    %v1090 = vpop.permute.xlu0 %1089
    %v1092 = vadd.f32 %v1082, %v1090
    %v1093 = vtanh.pop %v1092
    %1095 = vrot.lane.b32.xlu0 %v1093, 64
    %v1096 = vpop.permute.xlu0 %1095
    %v1098 = vmul.f32 %v1077, %v1096
    %v1099 = vld [vmem:[%s5] sm:$0xff]
    %v1100 = vld [vmem:[%s5 + $0x8] sm:$0xff]
    %v1101 = vld [vmem:[%s5 + $0x10] sm:$0xff]
    %v1102 = vld [vmem:[%s5 + $0x18] sm:$0xff]
    %v1103 = vld [vmem:[%s5 + $0x20] sm:$0xff]
    %v1104 = vld [vmem:[%s5 + $0x28] sm:$0xff]
    %v1105 = vld [vmem:[%s5 + $0x30] sm:$0xff]
    %v1106 = vld [vmem:[%s5 + $0x38] sm:$0xff]
    %v1107 = vld [vmem:[%s6] sm:$0x3]
    %v1109 = vlaneseq
    %v1110 = vshrl.u32 %v1109, 7
    %v1111 = vsub.s32 0, %v1110
    %v1112 = vrot.slane %v1107, %v1111
    %v1113 = vlaneseq
    %v1114 = vshrl.u32 %v1113, 7
    %v1115 = vsub.s32 1, %v1114
    %v1116 = vrot.slane %v1107, %v1115
    %v1120 = vrot.slane %v1098, 6
    %1121 = vrot.lane.b32.xlu0 %v1120, 32
    %v1122 = vpop.permute.xlu0 %1121
    %v1123 = vsel %vm256, %v1122, 0
    %1125 = vmatprep.subr.mxu0 0.0
    %1126 = vmatpush1.msra.mxu0 0.0
    %1127 = vmatprep.subr.mxu0 0.0
    %1128 = vmatpush1.msra.mxu0 0.0
    %1129 = vmatprep.subr.mxu0 0.0
    %1130 = vmatpush1.msra.mxu0 0.0
    %1131 = vmatprep.subr.mxu0 0.0
    %1132 = vmatpush1.msra.mxu0 0.0
    %1133 = vmatprep.subr.mxu0 0.0
    %1134 = vmatpush1.msra.mxu0 0.0
    %1135 = vmatprep.subr.mxu0 0.0
    %1136 = vmatpush1.msra.mxu0 0.0
    %1137 = vmatprep.subr.mxu0 0.0
    %1138 = vmatpush1.msra.mxu0 0.0
    %1139 = vmatprep.subr.mxu0 0.0
    %1140 = vmatpush1.msra.mxu0 0.0
    %1141 = vmatprep.subr.mxu0 0.0
    %1142 = vmatpush1.msra.mxu0 0.0
    %1143 = vmatprep.subr.mxu0 0.0
    %1144 = vmatpush1.msra.mxu0 0.0
    %1145 = vmatprep.subr.mxu0 0.0
    %1146 = vmatpush1.msra.mxu0 0.0
    %1147 = vmatprep.subr.mxu0 0.0
    %1148 = vmatpush1.msra.mxu0 0.0
    %1149 = vmatprep.subr.mxu0 %v1106
    %1150 = vmatpush1.msra.mxu0 %v1105
    %1151 = vmatprep.subr.mxu0 %v1104
    %1152 = vmatpush1.msra.mxu0 %v1103
    %1153 = vmatprep.subr.mxu0 %v1102
    %1154 = vmatpush1.msra.mxu0 %v1101
    %1155 = vmatprep.subr.mxu0 %v1100
    %1156 = vmatpush1.msra.mxu0 %v1099
    %1157 = vmatprep.subr.mxu0 0.0
    %1158 = vmatpush2.msra.mxu0 0.0
    %1159 = vmatprep.subr.mxu0 0.0
    %1160 = vmatpush2.msra.mxu0 0.0
    %1161 = vmatprep.subr.mxu0 0.0
    %1162 = vmatpush2.msra.mxu0 0.0
    %1163 = vmatprep.subr.mxu0 0.0
    %1164 = vmatpush2.msra.mxu0 0.0
    %1165 = vmatprep.subr.mxu0 0.0
    %1166 = vmatpush2.msra.mxu0 0.0
    %1167 = vmatprep.subr.mxu0 0.0
    %1168 = vmatpush2.msra.mxu0 0.0
    %1169 = vmatprep.subr.mxu0 0.0
    %1170 = vmatpush2.msra.mxu0 0.0
    %1171 = vmatprep.subr.mxu0 0.0
    %1172 = vmatpush2.msra.mxu0 0.0
    %1173 = vmatprep.subr.mxu0 0.0
    %1174 = vmatpush2.msra.mxu0 0.0
    %1175 = vmatprep.subr.mxu0 0.0
    %1176 = vmatpush2.msra.mxu0 0.0
    %1177 = vmatprep.subr.mxu0 0.0
    %1178 = vmatpush2.msra.mxu0 0.0
    %1179 = vmatprep.subr.mxu0 0.0
    %1180 = vmatpush2.msra.mxu0 0.0
    %1181 = vmatprep.subr.mxu0 0.0
    %1182 = vmatpush2.msra.mxu0 0.0
    %1183 = vmatprep.subr.mxu0 0.0
    %1184 = vmatpush2.msra.mxu0 0.0
    %1185 = vmatprep.subr.mxu0 0.0
    %1186 = vmatpush2.msra.mxu0 0.0
    %1187 = vmatprep.subr.mxu0 0.0
    %1188 = vmatpush2.msra.mxu0 0.0
    %1189 = vmatprep.mubr.f32.mxu0 0.0
    %1190 = vmatmul.mubr.f32.gmra.mxu0 %v1123
    %v1191 = vpop.f32.mrf.mxu0
    %v1192 = vadd.f32 %v1112, %v1191
    %v1193 = vpop.f32.mrf.mxu0
    %v1194 = vadd.f32 %v1116, %v1193
    %1195 = vdwg.mxu0
    %v1198 = vcombine.low %v1192, %v1194
    %v1200 = vunpack.c.l.s4 1983009808
    %v1201 = vunpack.c.0.s8 %v1200
    %v1202 = vlaneseq
    %v1203 = vshrl.u32 %v1202, 7
    %v1204 = vsub.s32 %v1201, %v1203
    %v1205 = vrot.slane %v1198, %v1204
    %vm1207 = vcmask 1041408
    %vm1208 = vcmask 519170
    %vm1209 = vmor %vm1208, %vm1207
    %1210 = vst.msk [vmem:[#allocation2] sm:$0xf] %vm1209, %v1205
    // Predicated region
    $region30: #{tpu_custom_call.1} parent=1 // pred_check
      _
    $region31: #{tpu_custom_call.1} parent=1 // pred_check_branch
      %1212 = sbr.rel (0) target = $region33
    $region32: #{tpu_custom_call.1} parent=1 // pred_region
      %s1214 = ssub.s32 64, 64
      %1215 = vsyncadd [#allocation3], %s1214
      %s1217 = sshll.u32 [#allocation2], 4
      %s1218 = int_to_ptr.vmem [resolvable:$true] %s1217
      %1220 = dma.vmem_to_hbm [thread:$0]  %s1218, 64, %s7, [#allocation3]
    $region33: #{tpu_custom_call.1} parent=1 // pred_fallthru
      _
    // Predicated region
    $region34: #{tpu_custom_call.1} parent=1 // pred_check
      _
    $region35: #{tpu_custom_call.1} parent=1 // pred_check_branch
      %1222 = sbr.rel (0) target = $region37
    $region36: #{tpu_custom_call.1} parent=1 // pred_region
      %1223 = dma.done [#allocation3], 64
    $region37: #{tpu_custom_call.1} parent=1 // pred_fallthru
      _
    %1224 = vsyncpa [#allocation3], 1

</llo_original>
